<compile_context>
chip_gen: v5e
topology: v5e:2x2
jax: 0.10.0
libtpu: 0.0.40
codegen_flags: <defaults>
</compile_context>

<pallas_src>
import functools

import jax
import jax.numpy as jnp
from jax import lax
from jax.experimental import pallas as pl
from jax.experimental.pallas import tpu as pltpu


# ---------------------------------------------------------------------------
# Fused kernel: one batch-block (bb batch elements) per grid step.
#   x block    : (bb, T, C)
#   w_qkv      : (C, 3*H*hs)   full   (columns = [Q heads | K heads | V heads])
#   wp         : (H*hs, C)     full
#   bp         : (1, C)        full
#   bias       : (bb*T, bb*T)  full   (0 where attend, -1e30 elsewhere;
#                                      block-diagonal causal)
#   out block  : (bb, T, C)
# ---------------------------------------------------------------------------
def _mha_fused_kernel(x_ref, wqkv_ref, wp_ref, bp_ref, bias_ref, o_ref,
                      *, num_heads, head_size):
    BB, T, C = x_ref.shape
    N = BB * T
    D = num_heads * head_size

    # Stack the bb batch elements along rows: (bb, T, C) -> (N, C).
    x2d = x_ref[...].reshape(N, C)

    # One wide QKV matmul for the whole batch-block: (N, C) @ (C, 3D).
    qkv = jnp.dot(x2d, wqkv_ref[...], preferred_element_type=jnp.float32)

    scale = head_size ** -0.5
    q_all = qkv[:, 0 * D:1 * D] * scale        # scale folded into q
    k_all = qkv[:, 1 * D:2 * D]
    v_all = qkv[:, 2 * D:3 * D]

    bias = bias_ref[...]                       # block-diagonal causal bias

    head_outs = []
    for h in range(num_heads):                 # static unrolled loop (H small)
        lo = h * head_size
        q = q_all[:, lo:lo + head_size]        # (N, hs)
        k = k_all[:, lo:lo + head_size]
        v = v_all[:, lo:lo + head_size]

        # scores for ALL bb batch elements of this head at once: (N, N).
        # Cross-batch entries are killed by the additive bias; each row keeps
        # its own causal window (diagonal always unmasked -> no NaNs).
        s = lax.dot_general(q, k, (((1,), (1,)), ((), ())),
                            preferred_element_type=jnp.float32) + bias

        # numerically-stable softmax; denominator reciprocal on the EUP
        m = jnp.max(s, axis=-1, keepdims=True)
        e = jnp.exp(s - m)
        p = e * pl.reciprocal(jnp.sum(e, axis=-1, keepdims=True), approx=True)

        head_outs.append(jnp.dot(p, v, preferred_element_type=jnp.float32))

    concat = jnp.concatenate(head_outs, axis=-1)                  # (N, D)

    # Output projection + bias, written lane-dense as the final slab.
    y = jnp.dot(concat, wp_ref[...],
                preferred_element_type=jnp.float32) + bp_ref[...]
    o_ref[...] = y.reshape(BB, T, C).astype(o_ref.dtype)


def multi_head_attention(x, wq, wk, wv, wp, bp, *, batch_block=None):
    """x: (B, T, C); wq/wk/wv: (H, C, hs); wp: (H*hs, C); bp: (C,)."""
    B, T, C = x.shape
    H, _, hs = wq.shape
    D = H * hs

    # Pick the batch-block size: largest divisor of B with bb*T <= 128 so the
    # in-step score matrix stays one lane-tile wide and VMEM use is trivial.
    if batch_block is None:
        bb = 1
        for cand in range(1, B + 1):
            if B % cand == 0 and cand * T <= 128:
                bb = cand
    else:
        bb = batch_block
        assert B % bb == 0, "batch_block must divide B"
    N = bb * T

    # Stack the per-head projections into one (C, 3*D) weight so the kernel
    # does a single wide QKV matmul.  Column order matches the in-kernel
    # slicing: [q_head0..q_headH | k_head0.. | v_head0..].
    def _stack(w):                      # (H, C, hs) -> (C, H*hs)
        return jnp.transpose(w, (1, 0, 2)).reshape(C, D)

    w_qkv = jnp.concatenate([_stack(wq), _stack(wk), _stack(wv)], axis=-1)

    # Block-diagonal causal additive bias shared by every grid step.
    causal = jnp.tril(jnp.ones((T, T), jnp.float32))
    block_mask = jnp.kron(jnp.eye(bb, dtype=jnp.float32), causal) > 0.0
    bias = jnp.where(block_mask, 0.0, -1e30).astype(jnp.float32)   # (N, N)

    kernel = functools.partial(_mha_fused_kernel, num_heads=H, head_size=hs)

    out = pl.pallas_call(
        kernel,
        out_shape=jax.ShapeDtypeStruct((B, T, C), jnp.float32),
        grid_spec=pltpu.PrefetchScalarGridSpec(
            num_scalar_prefetch=0,
            grid=(B // bb,),
            in_specs=[
                pl.BlockSpec((bb, T, C), lambda b: (b, 0, 0)),
                pl.BlockSpec((C, 3 * D), lambda b: (0, 0)),
                pl.BlockSpec((D, C), lambda b: (0, 0)),
                pl.BlockSpec((1, C), lambda b: (0, 0)),
                pl.BlockSpec((N, N), lambda b: (0, 0)),
            ],
            out_specs=pl.BlockSpec((bb, T, C), lambda b: (b, 0, 0)),
        ),
        compiler_params=pltpu.CompilerParams(
            dimension_semantics=("parallel",)),   # lets v7x split B over 2 TCs
    )(x, w_qkv, wp, bp.reshape(1, C), bias)

    # TODO(synk): dropout layers are identity in eval mode; no stochastic
    # dropout is applied here.
    return out


# ---------------------------------------------------------------------------
# Pure-JAX reference (mirrors the PyTorch forward, eval mode)
# ---------------------------------------------------------------------------
def _reference(x, wq, wk, wv, wp, bp):
    B, T, C = x.shape
    H, _, hs = wq.shape
    q = jnp.einsum("btc,hcd->bhtd", x, wq)
    k = jnp.einsum("btc,hcd->bhtd", x, wk)
    v = jnp.einsum("btc,hcd->bhtd", x, wv)
    w = jnp.einsum("bhtd,bhsd->bhts", q, k) * hs ** -0.5
    mask = jnp.tril(jnp.ones((T, T), dtype=bool))
    w = jnp.where(mask[None, None], w, -jnp.inf)
    w = jax.nn.softmax(w, axis=-1)
    o = jnp.einsum("bhts,bhsd->bhtd", w, v)
    o = jnp.transpose(o, (0, 2, 1, 3)).reshape(B, T, H * hs)
    return o @ wp + bp


if __name__ == "__main__":
    # Small config consistent with the module:
    B, T = 2, 8
    n_embd = 32
    num_heads = 4
    head_size = 8
    block_size = 16          # tril buffer covers at least T
    dropout = 0.0            # eval-mode / identity

    key = jax.random.PRNGKey(0)
    kx, kq, kk, kv, kp, kb = jax.random.split(key, 6)

    x = jax.random.normal(kx, (B, T, n_embd), dtype=jnp.float32)

    # Deterministic parameter init (uniform, like torch Linear's default range)
    bound_qkv = 1.0 / (n_embd ** 0.5)
    wq = jax.random.uniform(kq, (num_heads, n_embd, head_size),
                            minval=-bound_qkv, maxval=bound_qkv, dtype=jnp.float32)
    wk = jax.random.uniform(kk, (num_heads, n_embd, head_size),
                            minval=-bound_qkv, maxval=bound_qkv, dtype=jnp.float32)
    wv = jax.random.uniform(kv, (num_heads, n_embd, head_size),
                            minval=-bound_qkv, maxval=bound_qkv, dtype=jnp.float32)
    D = num_heads * head_size
    bound_p = 1.0 / (D ** 0.5)
    wp = jax.random.uniform(kp, (D, n_embd),
                            minval=-bound_p, maxval=bound_p, dtype=jnp.float32)
    bp = jax.random.uniform(kb, (n_embd,),
                            minval=-bound_p, maxval=bound_p, dtype=jnp.float32)

    out = multi_head_attention(x, wq, wk, wv, wp, bp)
    out = jax.block_until_ready(out)

    ref = _reference(x, wq, wk, wv, wp, bp)
    assert out.shape == (B, T, n_embd)
    # Tolerance accounts for the approximate (EUP) reciprocal in the softmax
    # normalizer; outputs are O(1) so 2e-3 is comfortably loose yet meaningful.
    assert jnp.allclose(out, ref, atol=2e-3, rtol=2e-3), "mismatch vs reference"

    print("KERNEL_OK")
</pallas_src>

<mosaic_0001>
module attributes {stable_mosaic.version = 11 : i64} {
  func.func @_mha_fused_kernel(%arg0: i32, %arg1: memref<2x8x32xf32, #tpu.memory_space<vmem>>, %arg2: memref<32x96xf32, #tpu.memory_space<vmem>>, %arg3: memref<32x32xf32, #tpu.memory_space<vmem>>, %arg4: memref<1x32xf32, #tpu.memory_space<vmem>>, %arg5: memref<16x16xf32, #tpu.memory_space<vmem>>, %arg6: memref<2x8x32xf32, #tpu.memory_space<vmem>>) attributes {dimension_semantics = [#tpu.dimension_semantics<parallel>], iteration_bounds = array<i64: 1>, scalar_prefetch = 0 : i64, scratch_operands = 0 : i64, tpu.core_type = #tpu.core_type<tc>, window_params = [{transform_indices = @transform_0, window_bounds = array<i64: 2, 8, 32>}, {pipeline_mode = #tpu.pipeline_mode<synchronous>, transform_indices = @transform_1, window_bounds = array<i64: 32, 96>}, {pipeline_mode = #tpu.pipeline_mode<synchronous>, transform_indices = @transform_2, window_bounds = array<i64: 32, 32>}, {pipeline_mode = #tpu.pipeline_mode<synchronous>, transform_indices = @transform_3, window_bounds = array<i64: 1, 32>}, {pipeline_mode = #tpu.pipeline_mode<synchronous>, transform_indices = @transform_4, window_bounds = array<i64: 16, 16>}, {transform_indices = @transform_5, window_bounds = array<i64: 2, 8, 32>}]} {
    %c0 = arith.constant 0 : index
    %c0_0 = arith.constant 0 : index
    %c0_1 = arith.constant 0 : index
    %0 = vector.load %arg1[%c0, %c0_0, %c0_1] : memref<2x8x32xf32, #tpu.memory_space<vmem>>, vector<2x8x32xf32>
    %1 = vector.shape_cast %0 : vector<2x8x32xf32> to vector<16x32xf32>
    %c0_2 = arith.constant 0 : index
    %c0_3 = arith.constant 0 : index
    %2 = vector.load %arg2[%c0_2, %c0_3] : memref<32x96xf32, #tpu.memory_space<vmem>>, vector<32x96xf32>
    %cst = arith.constant dense<0.000000e+00> : vector<16x96xf32>
    %3 = tpu.matmul %1, %2, %cst {dimension_numbers = #tpu.dot_dimension_numbers<[1], [0], [0], [1], [0, 0, 1, 1], [], []>} : vector<16x32xf32>, vector<32x96xf32>, vector<16x96xf32> -> vector<16x96xf32>
    %4 = vector.extract_strided_slice %3 {offsets = [0, 0], sizes = [16, 32], strides = [1, 1]} : vector<16x96xf32> to vector<16x32xf32>
    %cst_4 = arith.constant 0.353553385 : f32
    %5 = vector.broadcast %cst_4 : f32 to vector<16x32xf32>
    %6 = arith.mulf %4, %5 : vector<16x32xf32>
    %7 = vector.extract_strided_slice %3 {offsets = [0, 32], sizes = [16, 32], strides = [1, 1]} : vector<16x96xf32> to vector<16x32xf32>
    %8 = vector.extract_strided_slice %3 {offsets = [0, 64], sizes = [16, 32], strides = [1, 1]} : vector<16x96xf32> to vector<16x32xf32>
    %c0_5 = arith.constant 0 : index
    %c0_6 = arith.constant 0 : index
    %9 = vector.load %arg5[%c0_5, %c0_6] : memref<16x16xf32, #tpu.memory_space<vmem>>, vector<16x16xf32>
    %10 = vector.extract_strided_slice %6 {offsets = [0, 0], sizes = [16, 8], strides = [1, 1]} : vector<16x32xf32> to vector<16x8xf32>
    %11 = vector.extract_strided_slice %7 {offsets = [0, 0], sizes = [16, 8], strides = [1, 1]} : vector<16x32xf32> to vector<16x8xf32>
    %12 = vector.extract_strided_slice %8 {offsets = [0, 0], sizes = [16, 8], strides = [1, 1]} : vector<16x32xf32> to vector<16x8xf32>
    %cst_7 = arith.constant dense<0.000000e+00> : vector<16x16xf32>
    %13 = tpu.matmul %10, %11, %cst_7 {dimension_numbers = #tpu.dot_dimension_numbers<[1], [1], [0], [0], [0, 0, 1, 0], [], []>} : vector<16x8xf32>, vector<16x8xf32>, vector<16x16xf32> -> vector<16x16xf32>
    %14 = arith.addf %13, %9 : vector<16x16xf32>
    %cst_8 = arith.constant dense<0xFF800000> : vector<16xf32>
    %15 = vector.multi_reduction <maximumf>, %14, %cst_8 [1] : vector<16x16xf32> to vector<16xf32>
    %16 = vector.shape_cast %15 : vector<16xf32> to vector<16x1xf32>
    %17 = vector.broadcast %16 : vector<16x1xf32> to vector<16x16xf32>
    %18 = arith.subf %14, %17 : vector<16x16xf32>
    %19 = math.exp %18 : vector<16x16xf32>
    %cst_9 = arith.constant dense<0.000000e+00> : vector<16xf32>
    %20 = vector.multi_reduction <add>, %19, %cst_9 [1] : vector<16x16xf32> to vector<16xf32>
    %21 = vector.shape_cast %20 : vector<16xf32> to vector<16x1xf32>
    %22 = tpu.reciprocal %21 {approx = true} : vector<16x1xf32> -> vector<16x1xf32>
    %23 = vector.broadcast %22 : vector<16x1xf32> to vector<16x16xf32>
    %24 = arith.mulf %19, %23 : vector<16x16xf32>
    %cst_10 = arith.constant dense<0.000000e+00> : vector<16x8xf32>
    %25 = tpu.matmul %24, %12, %cst_10 {dimension_numbers = #tpu.dot_dimension_numbers<[1], [0], [0], [1], [0, 0, 1, 1], [], []>} : vector<16x16xf32>, vector<16x8xf32>, vector<16x8xf32> -> vector<16x8xf32>
    %26 = vector.extract_strided_slice %6 {offsets = [0, 8], sizes = [16, 8], strides = [1, 1]} : vector<16x32xf32> to vector<16x8xf32>
    %27 = vector.extract_strided_slice %7 {offsets = [0, 8], sizes = [16, 8], strides = [1, 1]} : vector<16x32xf32> to vector<16x8xf32>
    %28 = vector.extract_strided_slice %8 {offsets = [0, 8], sizes = [16, 8], strides = [1, 1]} : vector<16x32xf32> to vector<16x8xf32>
    %cst_11 = arith.constant dense<0.000000e+00> : vector<16x16xf32>
    %29 = tpu.matmul %26, %27, %cst_11 {dimension_numbers = #tpu.dot_dimension_numbers<[1], [1], [0], [0], [0, 0, 1, 0], [], []>} : vector<16x8xf32>, vector<16x8xf32>, vector<16x16xf32> -> vector<16x16xf32>
    %30 = arith.addf %29, %9 : vector<16x16xf32>
    %cst_12 = arith.constant dense<0xFF800000> : vector<16xf32>
    %31 = vector.multi_reduction <maximumf>, %30, %cst_12 [1] : vector<16x16xf32> to vector<16xf32>
    %32 = vector.shape_cast %31 : vector<16xf32> to vector<16x1xf32>
    %33 = vector.broadcast %32 : vector<16x1xf32> to vector<16x16xf32>
    %34 = arith.subf %30, %33 : vector<16x16xf32>
    %35 = math.exp %34 : vector<16x16xf32>
    %cst_13 = arith.constant dense<0.000000e+00> : vector<16xf32>
    %36 = vector.multi_reduction <add>, %35, %cst_13 [1] : vector<16x16xf32> to vector<16xf32>
    %37 = vector.shape_cast %36 : vector<16xf32> to vector<16x1xf32>
    %38 = tpu.reciprocal %37 {approx = true} : vector<16x1xf32> -> vector<16x1xf32>
    %39 = vector.broadcast %38 : vector<16x1xf32> to vector<16x16xf32>
    %40 = arith.mulf %35, %39 : vector<16x16xf32>
    %cst_14 = arith.constant dense<0.000000e+00> : vector<16x8xf32>
    %41 = tpu.matmul %40, %28, %cst_14 {dimension_numbers = #tpu.dot_dimension_numbers<[1], [0], [0], [1], [0, 0, 1, 1], [], []>} : vector<16x16xf32>, vector<16x8xf32>, vector<16x8xf32> -> vector<16x8xf32>
    %42 = vector.extract_strided_slice %6 {offsets = [0, 16], sizes = [16, 8], strides = [1, 1]} : vector<16x32xf32> to vector<16x8xf32>
    %43 = vector.extract_strided_slice %7 {offsets = [0, 16], sizes = [16, 8], strides = [1, 1]} : vector<16x32xf32> to vector<16x8xf32>
    %44 = vector.extract_strided_slice %8 {offsets = [0, 16], sizes = [16, 8], strides = [1, 1]} : vector<16x32xf32> to vector<16x8xf32>
    %cst_15 = arith.constant dense<0.000000e+00> : vector<16x16xf32>
    %45 = tpu.matmul %42, %43, %cst_15 {dimension_numbers = #tpu.dot_dimension_numbers<[1], [1], [0], [0], [0, 0, 1, 0], [], []>} : vector<16x8xf32>, vector<16x8xf32>, vector<16x16xf32> -> vector<16x16xf32>
    %46 = arith.addf %45, %9 : vector<16x16xf32>
    %cst_16 = arith.constant dense<0xFF800000> : vector<16xf32>
    %47 = vector.multi_reduction <maximumf>, %46, %cst_16 [1] : vector<16x16xf32> to vector<16xf32>
    %48 = vector.shape_cast %47 : vector<16xf32> to vector<16x1xf32>
    %49 = vector.broadcast %48 : vector<16x1xf32> to vector<16x16xf32>
    %50 = arith.subf %46, %49 : vector<16x16xf32>
    %51 = math.exp %50 : vector<16x16xf32>
    %cst_17 = arith.constant dense<0.000000e+00> : vector<16xf32>
    %52 = vector.multi_reduction <add>, %51, %cst_17 [1] : vector<16x16xf32> to vector<16xf32>
    %53 = vector.shape_cast %52 : vector<16xf32> to vector<16x1xf32>
    %54 = tpu.reciprocal %53 {approx = true} : vector<16x1xf32> -> vector<16x1xf32>
    %55 = vector.broadcast %54 : vector<16x1xf32> to vector<16x16xf32>
    %56 = arith.mulf %51, %55 : vector<16x16xf32>
    %cst_18 = arith.constant dense<0.000000e+00> : vector<16x8xf32>
    %57 = tpu.matmul %56, %44, %cst_18 {dimension_numbers = #tpu.dot_dimension_numbers<[1], [0], [0], [1], [0, 0, 1, 1], [], []>} : vector<16x16xf32>, vector<16x8xf32>, vector<16x8xf32> -> vector<16x8xf32>
    %58 = vector.extract_strided_slice %6 {offsets = [0, 24], sizes = [16, 8], strides = [1, 1]} : vector<16x32xf32> to vector<16x8xf32>
    %59 = vector.extract_strided_slice %7 {offsets = [0, 24], sizes = [16, 8], strides = [1, 1]} : vector<16x32xf32> to vector<16x8xf32>
    %60 = vector.extract_strided_slice %8 {offsets = [0, 24], sizes = [16, 8], strides = [1, 1]} : vector<16x32xf32> to vector<16x8xf32>
    %cst_19 = arith.constant dense<0.000000e+00> : vector<16x16xf32>
    %61 = tpu.matmul %58, %59, %cst_19 {dimension_numbers = #tpu.dot_dimension_numbers<[1], [1], [0], [0], [0, 0, 1, 0], [], []>} : vector<16x8xf32>, vector<16x8xf32>, vector<16x16xf32> -> vector<16x16xf32>
    %62 = arith.addf %61, %9 : vector<16x16xf32>
    %cst_20 = arith.constant dense<0xFF800000> : vector<16xf32>
    %63 = vector.multi_reduction <maximumf>, %62, %cst_20 [1] : vector<16x16xf32> to vector<16xf32>
    %64 = vector.shape_cast %63 : vector<16xf32> to vector<16x1xf32>
    %65 = vector.broadcast %64 : vector<16x1xf32> to vector<16x16xf32>
    %66 = arith.subf %62, %65 : vector<16x16xf32>
    %67 = math.exp %66 : vector<16x16xf32>
    %cst_21 = arith.constant dense<0.000000e+00> : vector<16xf32>
    %68 = vector.multi_reduction <add>, %67, %cst_21 [1] : vector<16x16xf32> to vector<16xf32>
    %69 = vector.shape_cast %68 : vector<16xf32> to vector<16x1xf32>
    %70 = tpu.reciprocal %69 {approx = true} : vector<16x1xf32> -> vector<16x1xf32>
    %71 = vector.broadcast %70 : vector<16x1xf32> to vector<16x16xf32>
    %72 = arith.mulf %67, %71 : vector<16x16xf32>
    %cst_22 = arith.constant dense<0.000000e+00> : vector<16x8xf32>
    %73 = tpu.matmul %72, %60, %cst_22 {dimension_numbers = #tpu.dot_dimension_numbers<[1], [0], [0], [1], [0, 0, 1, 1], [], []>} : vector<16x16xf32>, vector<16x8xf32>, vector<16x8xf32> -> vector<16x8xf32>
    %74 = tpu.concatenate %25, %41, %57, %73 in 1 : vector<16x8xf32>, vector<16x8xf32>, vector<16x8xf32>, vector<16x8xf32> -> vector<16x32xf32>
    %c0_23 = arith.constant 0 : index
    %c0_24 = arith.constant 0 : index
    %75 = vector.load %arg3[%c0_23, %c0_24] : memref<32x32xf32, #tpu.memory_space<vmem>>, vector<32x32xf32>
    %cst_25 = arith.constant dense<0.000000e+00> : vector<16x32xf32>
    %76 = tpu.matmul %74, %75, %cst_25 {dimension_numbers = #tpu.dot_dimension_numbers<[1], [0], [0], [1], [0, 0, 1, 1], [], []>} : vector<16x32xf32>, vector<32x32xf32>, vector<16x32xf32> -> vector<16x32xf32>
    %c0_26 = arith.constant 0 : index
    %c0_27 = arith.constant 0 : index
    %77 = vector.load %arg4[%c0_26, %c0_27] : memref<1x32xf32, #tpu.memory_space<vmem>>, vector<1x32xf32>
    %78 = vector.broadcast %77 : vector<1x32xf32> to vector<16x32xf32>
    %79 = arith.addf %76, %78 : vector<16x32xf32>
    %80 = vector.shape_cast %79 : vector<16x32xf32> to vector<2x8x32xf32>
    %c0_28 = arith.constant 0 : index
    %c0_29 = arith.constant 0 : index
    %c0_30 = arith.constant 0 : index
    %81 = vector.load %arg6[%c0_28, %c0_29, %c0_30] : memref<2x8x32xf32, #tpu.memory_space<vmem>>, vector<2x8x32xf32>
    tpu.vector_store %arg6[%c0_28, %c0_29, %c0_30], %80 {strides = array<i32>} : memref<2x8x32xf32, #tpu.memory_space<vmem>>, vector<2x8x32xf32>,
    return
  }
  func.func @transform_0(%arg0: i32) -> (i32, i32, i32) {
    %c0_i32 = arith.constant 0 : i32
    %c0_i32_0 = arith.constant 0 : i32
    %c0_i32_1 = arith.constant 0 : i32
    return %arg0, %c0_i32, %c0_i32_0 : i32, i32, i32
  }
  func.func @transform_1(%arg0: i32) -> (i32, i32) {
    %c0_i32 = arith.constant 0 : i32
    %c0_i32_0 = arith.constant 0 : i32
    %c0_i32_1 = arith.constant 0 : i32
    return %c0_i32, %c0_i32_0 : i32, i32
  }
  func.func @transform_2(%arg0: i32) -> (i32, i32) {
    %c0_i32 = arith.constant 0 : i32
    %c0_i32_0 = arith.constant 0 : i32
    %c0_i32_1 = arith.constant 0 : i32
    return %c0_i32, %c0_i32_0 : i32, i32
  }
  func.func @transform_3(%arg0: i32) -> (i32, i32) {
    %c0_i32 = arith.constant 0 : i32
    %c0_i32_0 = arith.constant 0 : i32
    %c0_i32_1 = arith.constant 0 : i32
    return %c0_i32, %c0_i32_0 : i32, i32
  }
  func.func @transform_4(%arg0: i32) -> (i32, i32) {
    %c0_i32 = arith.constant 0 : i32
    %c0_i32_0 = arith.constant 0 : i32
    %c0_i32_1 = arith.constant 0 : i32
    return %c0_i32, %c0_i32_0 : i32, i32
  }
  func.func @transform_5(%arg0: i32) -> (i32, i32, i32) {
    %c0_i32 = arith.constant 0 : i32
    %c0_i32_0 = arith.constant 0 : i32
    %c0_i32_1 = arith.constant 0 : i32
    return %arg0, %c0_i32, %c0_i32_0 : i32, i32, i32
  }
}

</mosaic_0001>

<llo_original>
// kernel: tpu_custom_call.1
$region0: #{tpu_custom_call.1}
  #allocation0 [shape = 'u32[]', space=smem, size = 0x4, offset = 0x4, fixed_abs, tag = 'smem constant byte address 0x4 - core index']
  #allocation1 [shape = 'u32[72,128]{1,0:T(1,128)}', space=vmem, size = 0x9000, scoped, tag = 'internal scratch']
  %s0 = inlined_call_operand.hbm [shape: f32[2,8,32], index: 0, kind: input, shape index: {}]
  %s1 = inlined_call_operand.hbm [shape: f32[32,96], index: 1, kind: input, shape index: {}]
  %s2 = inlined_call_operand.hbm [shape: f32[32,32], index: 2, kind: input, shape index: {}]
  %s3 = inlined_call_operand.vmem [shape: f32[1,32], index: 3, kind: input, shape index: {}]
  %s4 = inlined_call_operand.hbm [shape: f32[16,16], index: 4, kind: input, shape index: {}]
  %s5 = inlined_call_operand.hbm [shape: f32[2,8,32], index: 5, kind: output, shape index: {}]
  %s6 = sld [smem:[#allocation0]]
  $region46: #{tpu_custom_call.1} parent=0
    _
  %s8 = ssub.s32 1, %s6
  %s9 = scalar_select 0, %s8, %s6
  $region1: #{tpu_custom_call.1} parent=0
    #allocation2 [shape = 'u8[8192]{0}', space=vmem, size = 0x2000, scoped, tag = 'input window, operand 0, single buffered']
    #allocation3 [shape = 's32[1]{0}', space=sflag, size = 0x4, scoped, tag = 'scoped memory for tpu_custom_call.1']
    #allocation4 [shape = 's32[1]{0}', space=sflag, size = 0x4, scoped, tag = 'scoped memory for tpu_custom_call.1']
    #allocation5 [shape = 'u8[16384]{0}', space=vmem, size = 0x4000, scoped, tag = 'input window, operand 1, single buffered']
    #allocation6 [shape = 's32[1]{0}', space=sflag, size = 0x4, scoped, tag = 'scoped memory for tpu_custom_call.1']
    #allocation7 [shape = 'u8[16384]{0}', space=vmem, size = 0x4000, scoped, tag = 'input window, operand 2, single buffered']
    #allocation8 [shape = 'u8[8192]{0}', space=vmem, size = 0x2000, scoped, tag = 'input window, operand 4, single buffered']
    #allocation9 [shape = 's32[1]{0}', space=sflag, size = 0x4, scoped, tag = 'scoped memory for tpu_custom_call.1']
    #allocation10 [shape = 'u8[8192]{0}', space=vmem, size = 0x2000, scoped, tag = 'output window, operand 0, single buffered']
    %10 = vsyncpa [#allocation3], 0
    %11 = vsyncpa [#allocation6], 0
    %12 = vsyncpa [#allocation9], 0
    %13 = vsyncpa [#allocation4], 0
    // Predicated region
    $region2: #{tpu_custom_call.1} parent=1 // pred_check
      _
    $region3: #{tpu_custom_call.1} parent=1 // pred_check_branch
      %15 = sbr.rel (0) target = $region5
    $region4: #{tpu_custom_call.1} parent=1 // pred_region
      %17 = vsyncadd [#allocation3], 0
      %s18 = sshll.u32 %s0, 4
      %s19 = int_to_ptr.hbm [resolvable:$true] %s18
      %s20 = sshll.u32 [#allocation2], 4
      %s21 = int_to_ptr.vmem [resolvable:$true] %s20
      %26 = dma.hbm_to_vmem [thread:$0]  %s19, 256, %s21, [#allocation3], 128, 128, 8
    $region5: #{tpu_custom_call.1} parent=1 // pred_fallthru
      _
    // Predicated region
    $region6: #{tpu_custom_call.1} parent=1 // pred_check
      _
    $region7: #{tpu_custom_call.1} parent=1 // pred_check_branch
      %28 = sbr.rel (0) target = $region9
    $region8: #{tpu_custom_call.1} parent=1 // pred_region
      %30 = vsyncadd [#allocation6], 0
      %s31 = sshll.u32 %s1, 4
      %s32 = int_to_ptr.hbm [resolvable:$true] %s31
      %s33 = sshll.u32 [#allocation5], 4
      %s34 = int_to_ptr.vmem [resolvable:$true] %s33
      %39 = dma.hbm_to_vmem [thread:$0]  %s32, 512, %s34, [#allocation6], 128, 128, 8
    $region9: #{tpu_custom_call.1} parent=1 // pred_fallthru
      _
    // Predicated region
    $region10: #{tpu_custom_call.1} parent=1 // pred_check
      _
    $region11: #{tpu_custom_call.1} parent=1 // pred_check_branch
      %41 = sbr.rel (0) target = $region13
    $region12: #{tpu_custom_call.1} parent=1 // pred_region
      %43 = vsyncadd [#allocation6], 0
      %s44 = sshll.u32 %s2, 4
      %s45 = int_to_ptr.hbm [resolvable:$true] %s44
      %s46 = sshll.u32 [#allocation7], 4
      %s47 = int_to_ptr.vmem [resolvable:$true] %s46
      %52 = dma.hbm_to_vmem [thread:$0]  %s45, 512, %s47, [#allocation6], 128, 128, 8
    $region13: #{tpu_custom_call.1} parent=1 // pred_fallthru
      _
    // Predicated region
    $region14: #{tpu_custom_call.1} parent=1 // pred_check
      _
    $region15: #{tpu_custom_call.1} parent=1 // pred_check_branch
      %54 = sbr.rel (0) target = $region17
    $region16: #{tpu_custom_call.1} parent=1 // pred_region
      _
    $region17: #{tpu_custom_call.1} parent=1 // pred_fallthru
      _
    // Predicated region
    $region18: #{tpu_custom_call.1} parent=1 // pred_check
      _
    $region19: #{tpu_custom_call.1} parent=1 // pred_check_branch
      %56 = sbr.rel (0) target = $region21
    $region20: #{tpu_custom_call.1} parent=1 // pred_region
      %58 = vsyncadd [#allocation9], 0
      %s59 = sshll.u32 %s4, 4
      %s60 = int_to_ptr.hbm [resolvable:$true] %s59
      %s61 = sshll.u32 [#allocation8], 4
      %s62 = int_to_ptr.vmem [resolvable:$true] %s61
      %67 = dma.hbm_to_vmem [thread:$0]  %s60, 256, %s62, [#allocation9], 128, 128, 8
    $region21: #{tpu_custom_call.1} parent=1 // pred_fallthru
      _
    // Predicated region
    $region22: #{tpu_custom_call.1} parent=1 // pred_check
      _
    $region23: #{tpu_custom_call.1} parent=1 // pred_check_branch
      %69 = sbr.rel (0) target = $region25
    $region24: #{tpu_custom_call.1} parent=1 // pred_region
      %71 = dma.done [#allocation3], 256
    $region25: #{tpu_custom_call.1} parent=1 // pred_fallthru
      _
    // Predicated region
    $region26: #{tpu_custom_call.1} parent=1 // pred_check
      _
    $region27: #{tpu_custom_call.1} parent=1 // pred_check_branch
      %73 = sbr.rel (0) target = $region29
    $region28: #{tpu_custom_call.1} parent=1 // pred_region
      %75 = dma.done [#allocation6], 512
    $region29: #{tpu_custom_call.1} parent=1 // pred_fallthru
      _
    // Predicated region
    $region30: #{tpu_custom_call.1} parent=1 // pred_check
      _
    $region31: #{tpu_custom_call.1} parent=1 // pred_check_branch
      %77 = sbr.rel (0) target = $region33
    $region32: #{tpu_custom_call.1} parent=1 // pred_region
      %79 = dma.done [#allocation6], 512
    $region33: #{tpu_custom_call.1} parent=1 // pred_fallthru
      _
    // Predicated region
    $region34: #{tpu_custom_call.1} parent=1 // pred_check
      _
    $region35: #{tpu_custom_call.1} parent=1 // pred_check_branch
      %81 = sbr.rel (0) target = $region37
    $region36: #{tpu_custom_call.1} parent=1 // pred_region
      %83 = dma.done [#allocation9], 256
    $region37: #{tpu_custom_call.1} parent=1 // pred_fallthru
      _
    %v84 = vld [vmem:[#allocation2] sm:$0xff]
    %v85 = vld [vmem:[#allocation2 + $0x8] sm:$0xff]
    %v86 = vld [vmem:[#allocation5] sm:$0xff]
    %v87 = vld [vmem:[#allocation5 + $0x8] sm:$0xff]
    %v88 = vld [vmem:[#allocation5 + $0x10] sm:$0xff]
    %v89 = vld [vmem:[#allocation5 + $0x18] sm:$0xff]
    %vm90 = vcmask 261120
    %v92 = vsel %vm90, %v84, 0
    %v95 = vsel %vm90, %v85, 0
    %97 = vmatpush.msra.mxu0 0.0
    %98 = vmatpush.msra.mxu0 0.0
    %99 = vmatpush.msra.mxu0 0.0
    %100 = vmatpush.msra.mxu0 0.0
    %101 = vmatpush.msra.mxu0 0.0
    %102 = vmatpush.msra.mxu0 0.0
    %103 = vmatpush.msra.mxu0 0.0
    %104 = vmatpush.msra.mxu0 0.0
    %105 = vmatpush.msra.mxu0 0.0
    %106 = vmatpush.msra.mxu0 0.0
    %107 = vmatpush.msra.mxu0 0.0
    %108 = vmatpush.msra.mxu0 0.0
    %109 = vmatpush.msra.mxu0 %v89
    %110 = vmatpush.msra.mxu0 %v88
    %111 = vmatpush.msra.mxu0 %v87
    %112 = vmatpush.msra.mxu0 %v86
    %113 = vmatmul.f32.gmra.mxu0 %v92
    %v114 = vpop.f32.mrf.mxu0
    %v115 = vadd.f32 0.0, %v114
    %116 = vmatmul.f32.gmra.mxu0 %v95
    %v117 = vpop.f32.mrf.mxu0
    %v118 = vadd.f32 0.0, %v117
    %119 = vdwg.mxu0
    %v120 = vmul.f32 %v115, 0.35355338
    %v121 = vmul.f32 %v118, 0.35355338
    %v122 = vld [vmem:[#allocation8] sm:$0xff]
    %v123 = vld [vmem:[#allocation8 + $0x8] sm:$0xff]
    %126 = vrot.lane.b32.xlu0 %v115, 96
    %v127 = vpop.permute.xlu0 %126
    %128 = vrot.lane.b32.xlu0 %v118, 96
    %v129 = vpop.permute.xlu0 %128
    %vm130 = vcmask 64512
    %v132 = vsel %vm130, %v120, 0
    %v135 = vsel %vm130, %v121, 0
    %v137 = vsel %vm130, %v127, 0
    %v139 = vsel %vm130, %v129, 0
    %141 = vmatpush.xpose.msra.mxu0 0.0
    %142 = vmatpush.xpose.msra.mxu0 0.0
    %143 = vmatpush.xpose.msra.mxu0 0.0
    %144 = vmatpush.xpose.msra.mxu0 0.0
    %145 = vmatpush.xpose.msra.mxu0 0.0
    %146 = vmatpush.xpose.msra.mxu0 0.0
    %147 = vmatpush.xpose.msra.mxu0 0.0
    %148 = vmatpush.xpose.msra.mxu0 0.0
    %149 = vmatpush.xpose.msra.mxu0 0.0
    %150 = vmatpush.xpose.msra.mxu0 0.0
    %151 = vmatpush.xpose.msra.mxu0 0.0
    %152 = vmatpush.xpose.msra.mxu0 0.0
    %153 = vmatpush.xpose.msra.mxu0 0.0
    %154 = vmatpush.xpose.msra.mxu0 0.0
    %155 = vmatpush.xpose.msra.mxu0 %v139
    %156 = vmatpush.xpose.msra.mxu0 %v137
    %157 = vmatmul.f32.gmra.mxu0 %v132
    %v158 = vpop.f32.mrf.mxu0
    %v159 = vadd.f32 %v122, %v158
    %160 = vmatmul.f32.gmra.mxu0 %v135
    %v161 = vpop.f32.mrf.mxu0
    %v162 = vadd.f32 %v123, %v161
    %163 = vdwg.mxu0
    %vm164 = vcmask 130048
    %v165 = vsel %vm164, %v159, -inf
    %166 = vmax.xlane.f32.xlu0 %v165
    %v167 = vpop.xlane.xlu0 %166
    %v168 = vsel %vm164, %v162, -inf
    %169 = vmax.xlane.f32.xlu0 %v168
    %v170 = vpop.xlane.xlu0 %169
    %v171 = vsub.f32 %v159, %v167
    %v172 = vsub.f32 %v162, %v170
    %v173 = vmul.f32 %v171, 1.442695
    %v174 = vpow.pop %v173
    %v175 = vmul.f32 %v172, 1.442695
    %v176 = vpow.pop %v175
    %v177 = vsel %vm164, %v174, 0.0
    %178 = vadd.xlane.f32.xlu0 %v177
    %v179 = vpop.xlane.xlu0 %178
    %v180 = vsel %vm164, %v176, 0.0
    %181 = vadd.xlane.f32.xlu0 %v180
    %v182 = vpop.xlane.xlu0 %181
    %v183 = vrcp.pop %v179
    %v184 = vrcp.pop %v182
    %v185 = vmul.f32 %v174, %v183
    %v186 = vmul.f32 %v176, %v184
    %187 = vrot.lane.b32.xlu0 %v115, 64
    %v188 = vpop.permute.xlu0 %187
    %189 = vrot.lane.b32.xlu0 %v118, 64
    %v190 = vpop.permute.xlu0 %189
    %v194 = vsel %vm164, %v185, 0
    %v197 = vsel %vm164, %v186, 0
    %199 = vmatpush.msra.mxu0 0.0
    %200 = vmatpush.msra.mxu0 0.0
    %201 = vmatpush.msra.mxu0 0.0
    %202 = vmatpush.msra.mxu0 0.0
    %203 = vmatpush.msra.mxu0 0.0
    %204 = vmatpush.msra.mxu0 0.0
    %205 = vmatpush.msra.mxu0 0.0
    %206 = vmatpush.msra.mxu0 0.0
    %207 = vmatpush.msra.mxu0 0.0
    %208 = vmatpush.msra.mxu0 0.0
    %209 = vmatpush.msra.mxu0 0.0
    %210 = vmatpush.msra.mxu0 0.0
    %211 = vmatpush.msra.mxu0 0.0
    %212 = vmatpush.msra.mxu0 0.0
    %213 = vmatpush.msra.mxu0 %v190
    %214 = vmatpush.msra.mxu0 %v188
    %215 = vmatmul.f32.gmra.mxu0 %v194
    %v216 = vpop.f32.mrf.mxu0
    %v217 = vadd.f32 0.0, %v216
    %218 = vmatmul.f32.gmra.mxu0 %v197
    %v219 = vpop.f32.mrf.mxu0
    %v220 = vadd.f32 0.0, %v219
    %221 = vdwg.mxu0
    %222 = vrot.lane.b32.xlu0 %v120, 120
    %v223 = vpop.permute.xlu0 %222
    %224 = vrot.lane.b32.xlu0 %v121, 120
    %v225 = vpop.permute.xlu0 %224
    %226 = vrot.lane.b32.xlu0 %v115, 88
    %v227 = vpop.permute.xlu0 %226
    %228 = vrot.lane.b32.xlu0 %v118, 88
    %v229 = vpop.permute.xlu0 %228
    %v230 = vsel %vm130, %v223, 0
    %v232 = vsel %vm130, %v225, 0
    %v234 = vsel %vm130, %v227, 0
    %v236 = vsel %vm130, %v229, 0
    %238 = vmatpush.xpose.msra.mxu0 0.0
    %239 = vmatpush.xpose.msra.mxu0 0.0
    %240 = vmatpush.xpose.msra.mxu0 0.0
    %241 = vmatpush.xpose.msra.mxu0 0.0
    %242 = vmatpush.xpose.msra.mxu0 0.0
    %243 = vmatpush.xpose.msra.mxu0 0.0
    %244 = vmatpush.xpose.msra.mxu0 0.0
    %245 = vmatpush.xpose.msra.mxu0 0.0
    %246 = vmatpush.xpose.msra.mxu0 0.0
    %247 = vmatpush.xpose.msra.mxu0 0.0
    %248 = vmatpush.xpose.msra.mxu0 0.0
    %249 = vmatpush.xpose.msra.mxu0 0.0
    %250 = vmatpush.xpose.msra.mxu0 0.0
    %251 = vmatpush.xpose.msra.mxu0 0.0
    %252 = vmatpush.xpose.msra.mxu0 %v236
    %253 = vmatpush.xpose.msra.mxu0 %v234
    %254 = vmatmul.f32.gmra.mxu0 %v230
    %v255 = vpop.f32.mrf.mxu0
    %v256 = vadd.f32 %v122, %v255
    %257 = vmatmul.f32.gmra.mxu0 %v232
    %v258 = vpop.f32.mrf.mxu0
    %v259 = vadd.f32 %v123, %v258
    %260 = vdwg.mxu0
    %v261 = vsel %vm164, %v256, -inf
    %262 = vmax.xlane.f32.xlu0 %v261
    %v263 = vpop.xlane.xlu0 %262
    %v264 = vsel %vm164, %v259, -inf
    %265 = vmax.xlane.f32.xlu0 %v264
    %v266 = vpop.xlane.xlu0 %265
    %v267 = vsub.f32 %v256, %v263
    %v268 = vsub.f32 %v259, %v266
    %v269 = vmul.f32 %v267, 1.442695
    %v270 = vpow.pop %v269
    %v271 = vmul.f32 %v268, 1.442695
    %v272 = vpow.pop %v271
    %v273 = vsel %vm164, %v270, 0.0
    %274 = vadd.xlane.f32.xlu0 %v273
    %v275 = vpop.xlane.xlu0 %274
    %v276 = vsel %vm164, %v272, 0.0
    %277 = vadd.xlane.f32.xlu0 %v276
    %v278 = vpop.xlane.xlu0 %277
    %v279 = vrcp.pop %v275
    %v280 = vrcp.pop %v278
    %v281 = vmul.f32 %v270, %v279
    %v282 = vmul.f32 %v272, %v280
    %283 = vrot.lane.b32.xlu0 %v115, 56
    %v284 = vpop.permute.xlu0 %283
    %285 = vrot.lane.b32.xlu0 %v118, 56
    %v286 = vpop.permute.xlu0 %285
    %v290 = vsel %vm164, %v281, 0
    %v293 = vsel %vm164, %v282, 0
    %295 = vmatpush.msra.mxu0 0.0
    %296 = vmatpush.msra.mxu0 0.0
    %297 = vmatpush.msra.mxu0 0.0
    %298 = vmatpush.msra.mxu0 0.0
    %299 = vmatpush.msra.mxu0 0.0
    %300 = vmatpush.msra.mxu0 0.0
    %301 = vmatpush.msra.mxu0 0.0
    %302 = vmatpush.msra.mxu0 0.0
    %303 = vmatpush.msra.mxu0 0.0
    %304 = vmatpush.msra.mxu0 0.0
    %305 = vmatpush.msra.mxu0 0.0
    %306 = vmatpush.msra.mxu0 0.0
    %307 = vmatpush.msra.mxu0 0.0
    %308 = vmatpush.msra.mxu0 0.0
    %309 = vmatpush.msra.mxu0 %v286
    %310 = vmatpush.msra.mxu0 %v284
    %311 = vmatmul.f32.gmra.mxu0 %v290
    %v312 = vpop.f32.mrf.mxu0
    %v313 = vadd.f32 0.0, %v312
    %314 = vmatmul.f32.gmra.mxu0 %v293
    %v315 = vpop.f32.mrf.mxu0
    %v316 = vadd.f32 0.0, %v315
    %317 = vdwg.mxu0
    %318 = vrot.lane.b32.xlu0 %v120, 112
    %v319 = vpop.permute.xlu0 %318
    %320 = vrot.lane.b32.xlu0 %v121, 112
    %v321 = vpop.permute.xlu0 %320
    %322 = vrot.lane.b32.xlu0 %v115, 80
    %v323 = vpop.permute.xlu0 %322
    %324 = vrot.lane.b32.xlu0 %v118, 80
    %v325 = vpop.permute.xlu0 %324
    %v326 = vsel %vm130, %v319, 0
    %v328 = vsel %vm130, %v321, 0
    %v330 = vsel %vm130, %v323, 0
    %v332 = vsel %vm130, %v325, 0
    %334 = vmatpush.xpose.msra.mxu0 0.0
    %335 = vmatpush.xpose.msra.mxu0 0.0
    %336 = vmatpush.xpose.msra.mxu0 0.0
    %337 = vmatpush.xpose.msra.mxu0 0.0
    %338 = vmatpush.xpose.msra.mxu0 0.0
    %339 = vmatpush.xpose.msra.mxu0 0.0
    %340 = vmatpush.xpose.msra.mxu0 0.0
    %341 = vmatpush.xpose.msra.mxu0 0.0
    %342 = vmatpush.xpose.msra.mxu0 0.0
    %343 = vmatpush.xpose.msra.mxu0 0.0
    %344 = vmatpush.xpose.msra.mxu0 0.0
    %345 = vmatpush.xpose.msra.mxu0 0.0
    %346 = vmatpush.xpose.msra.mxu0 0.0
    %347 = vmatpush.xpose.msra.mxu0 0.0
    %348 = vmatpush.xpose.msra.mxu0 %v332
    %349 = vmatpush.xpose.msra.mxu0 %v330
    %350 = vmatmul.f32.gmra.mxu0 %v326
    %v351 = vpop.f32.mrf.mxu0
    %v352 = vadd.f32 %v122, %v351
    %353 = vmatmul.f32.gmra.mxu0 %v328
    %v354 = vpop.f32.mrf.mxu0
    %v355 = vadd.f32 %v123, %v354
    %356 = vdwg.mxu0
    %v357 = vsel %vm164, %v352, -inf
    %358 = vmax.xlane.f32.xlu0 %v357
    %v359 = vpop.xlane.xlu0 %358
    %v360 = vsel %vm164, %v355, -inf
    %361 = vmax.xlane.f32.xlu0 %v360
    %v362 = vpop.xlane.xlu0 %361
    %v363 = vsub.f32 %v352, %v359
    %v364 = vsub.f32 %v355, %v362
    %v365 = vmul.f32 %v363, 1.442695
    %v366 = vpow.pop %v365
    %v367 = vmul.f32 %v364, 1.442695
    %v368 = vpow.pop %v367
    %v369 = vsel %vm164, %v366, 0.0
    %370 = vadd.xlane.f32.xlu0 %v369
    %v371 = vpop.xlane.xlu0 %370
    %v372 = vsel %vm164, %v368, 0.0
    %373 = vadd.xlane.f32.xlu0 %v372
    %v374 = vpop.xlane.xlu0 %373
    %v375 = vrcp.pop %v371
    %v376 = vrcp.pop %v374
    %v377 = vmul.f32 %v366, %v375
    %v378 = vmul.f32 %v368, %v376
    %379 = vrot.lane.b32.xlu0 %v115, 48
    %v380 = vpop.permute.xlu0 %379
    %381 = vrot.lane.b32.xlu0 %v118, 48
    %v382 = vpop.permute.xlu0 %381
    %v386 = vsel %vm164, %v377, 0
    %v389 = vsel %vm164, %v378, 0
    %391 = vmatpush.msra.mxu0 0.0
    %392 = vmatpush.msra.mxu0 0.0
    %393 = vmatpush.msra.mxu0 0.0
    %394 = vmatpush.msra.mxu0 0.0
    %395 = vmatpush.msra.mxu0 0.0
    %396 = vmatpush.msra.mxu0 0.0
    %397 = vmatpush.msra.mxu0 0.0
    %398 = vmatpush.msra.mxu0 0.0
    %399 = vmatpush.msra.mxu0 0.0
    %400 = vmatpush.msra.mxu0 0.0
    %401 = vmatpush.msra.mxu0 0.0
    %402 = vmatpush.msra.mxu0 0.0
    %403 = vmatpush.msra.mxu0 0.0
    %404 = vmatpush.msra.mxu0 0.0
    %405 = vmatpush.msra.mxu0 %v382
    %406 = vmatpush.msra.mxu0 %v380
    %407 = vmatmul.f32.gmra.mxu0 %v386
    %v408 = vpop.f32.mrf.mxu0
    %v409 = vadd.f32 0.0, %v408
    %410 = vmatmul.f32.gmra.mxu0 %v389
    %v411 = vpop.f32.mrf.mxu0
    %v412 = vadd.f32 0.0, %v411
    %413 = vdwg.mxu0
    %414 = vrot.lane.b32.xlu0 %v120, 104
    %v415 = vpop.permute.xlu0 %414
    %416 = vrot.lane.b32.xlu0 %v121, 104
    %v417 = vpop.permute.xlu0 %416
    %418 = vrot.lane.b32.xlu0 %v115, 72
    %v419 = vpop.permute.xlu0 %418
    %420 = vrot.lane.b32.xlu0 %v118, 72
    %v421 = vpop.permute.xlu0 %420
    %v422 = vsel %vm130, %v415, 0
    %v424 = vsel %vm130, %v417, 0
    %v426 = vsel %vm130, %v419, 0
    %v428 = vsel %vm130, %v421, 0
    %430 = vmatpush.xpose.msra.mxu0 0.0
    %431 = vmatpush.xpose.msra.mxu0 0.0
    %432 = vmatpush.xpose.msra.mxu0 0.0
    %433 = vmatpush.xpose.msra.mxu0 0.0
    %434 = vmatpush.xpose.msra.mxu0 0.0
    %435 = vmatpush.xpose.msra.mxu0 0.0
    %436 = vmatpush.xpose.msra.mxu0 0.0
    %437 = vmatpush.xpose.msra.mxu0 0.0
    %438 = vmatpush.xpose.msra.mxu0 0.0
    %439 = vmatpush.xpose.msra.mxu0 0.0
    %440 = vmatpush.xpose.msra.mxu0 0.0
    %441 = vmatpush.xpose.msra.mxu0 0.0
    %442 = vmatpush.xpose.msra.mxu0 0.0
    %443 = vmatpush.xpose.msra.mxu0 0.0
    %444 = vmatpush.xpose.msra.mxu0 %v428
    %445 = vmatpush.xpose.msra.mxu0 %v426
    %446 = vmatmul.f32.gmra.mxu0 %v422
    %v447 = vpop.f32.mrf.mxu0
    %v448 = vadd.f32 %v122, %v447
    %449 = vmatmul.f32.gmra.mxu0 %v424
    %v450 = vpop.f32.mrf.mxu0
    %v451 = vadd.f32 %v123, %v450
    %452 = vdwg.mxu0
    %v453 = vsel %vm164, %v448, -inf
    %454 = vmax.xlane.f32.xlu0 %v453
    %v455 = vpop.xlane.xlu0 %454
    %v456 = vsel %vm164, %v451, -inf
    %457 = vmax.xlane.f32.xlu0 %v456
    %v458 = vpop.xlane.xlu0 %457
    %v459 = vsub.f32 %v448, %v455
    %v460 = vsub.f32 %v451, %v458
    %v461 = vmul.f32 %v459, 1.442695
    %v462 = vpow.pop %v461
    %v463 = vmul.f32 %v460, 1.442695
    %v464 = vpow.pop %v463
    %v465 = vsel %vm164, %v462, 0.0
    %466 = vadd.xlane.f32.xlu0 %v465
    %v467 = vpop.xlane.xlu0 %466
    %v468 = vsel %vm164, %v464, 0.0
    %469 = vadd.xlane.f32.xlu0 %v468
    %v470 = vpop.xlane.xlu0 %469
    %v471 = vrcp.pop %v467
    %v472 = vrcp.pop %v470
    %v473 = vmul.f32 %v462, %v471
    %v474 = vmul.f32 %v464, %v472
    %475 = vrot.lane.b32.xlu0 %v115, 40
    %v476 = vpop.permute.xlu0 %475
    %477 = vrot.lane.b32.xlu0 %v118, 40
    %v478 = vpop.permute.xlu0 %477
    %v482 = vsel %vm164, %v473, 0
    %v485 = vsel %vm164, %v474, 0
    %487 = vmatpush.msra.mxu0 0.0
    %488 = vmatpush.msra.mxu0 0.0
    %489 = vmatpush.msra.mxu0 0.0
    %490 = vmatpush.msra.mxu0 0.0
    %491 = vmatpush.msra.mxu0 0.0
    %492 = vmatpush.msra.mxu0 0.0
    %493 = vmatpush.msra.mxu0 0.0
    %494 = vmatpush.msra.mxu0 0.0
    %495 = vmatpush.msra.mxu0 0.0
    %496 = vmatpush.msra.mxu0 0.0
    %497 = vmatpush.msra.mxu0 0.0
    %498 = vmatpush.msra.mxu0 0.0
    %499 = vmatpush.msra.mxu0 0.0
    %500 = vmatpush.msra.mxu0 0.0
    %501 = vmatpush.msra.mxu0 %v478
    %502 = vmatpush.msra.mxu0 %v476
    %503 = vmatmul.f32.gmra.mxu0 %v482
    %v504 = vpop.f32.mrf.mxu0
    %v505 = vadd.f32 0.0, %v504
    %506 = vmatmul.f32.gmra.mxu0 %v485
    %v507 = vpop.f32.mrf.mxu0
    %v508 = vadd.f32 0.0, %v507
    %509 = vdwg.mxu0
    %512 = vrot.lane.b32.xlu0 %v313, 8
    %v513 = vpop.permute.xlu0 %512
    %514 = vrot.lane.b32.xlu0 %v316, 8
    %v515 = vpop.permute.xlu0 %514
    %520 = vrot.lane.b32.xlu0 %v409, 16
    %v521 = vpop.permute.xlu0 %520
    %522 = vrot.lane.b32.xlu0 %v412, 16
    %v523 = vpop.permute.xlu0 %522
    %528 = vrot.lane.b32.xlu0 %v505, 24
    %v529 = vpop.permute.xlu0 %528
    %530 = vrot.lane.b32.xlu0 %v508, 24
    %v531 = vpop.permute.xlu0 %530
    %v534 = vsel %vm130, %v217, %v513
    %v535 = vsel %vm130, %v220, %v515
    %v536 = vsel %vm164, %v534, %v521
    %v537 = vsel %vm164, %v535, %v523
    %vm538 = vcmask 195584
    %v539 = vsel %vm538, %v536, %v529
    %v540 = vsel %vm538, %v537, %v531
    %v541 = vld [vmem:[#allocation7] sm:$0xff]
    %v542 = vld [vmem:[#allocation7 + $0x8] sm:$0xff]
    %v543 = vld [vmem:[#allocation7 + $0x10] sm:$0xff]
    %v544 = vld [vmem:[#allocation7 + $0x18] sm:$0xff]
    %v545 = vld [vmem:[%s3] sm:$0x1]
    %v547 = vperm.slane %v545, 0
    %v550 = vsel %vm90, %v539, 0
    %v553 = vsel %vm90, %v540, 0
    %555 = vmatpush.msra.mxu0 0.0
    %556 = vmatpush.msra.mxu0 0.0
    %557 = vmatpush.msra.mxu0 0.0
    %558 = vmatpush.msra.mxu0 0.0
    %559 = vmatpush.msra.mxu0 0.0
    %560 = vmatpush.msra.mxu0 0.0
    %561 = vmatpush.msra.mxu0 0.0
    %562 = vmatpush.msra.mxu0 0.0
    %563 = vmatpush.msra.mxu0 0.0
    %564 = vmatpush.msra.mxu0 0.0
    %565 = vmatpush.msra.mxu0 0.0
    %566 = vmatpush.msra.mxu0 0.0
    %567 = vmatpush.msra.mxu0 %v544
    %568 = vmatpush.msra.mxu0 %v543
    %569 = vmatpush.msra.mxu0 %v542
    %570 = vmatpush.msra.mxu0 %v541
    %571 = vmatmul.f32.gmra.mxu0 %v550
    %v572 = vpop.f32.mrf.mxu0
    %v573 = vadd.f32 %v547, %v572
    %574 = vmatmul.f32.gmra.mxu0 %v553
    %v575 = vpop.f32.mrf.mxu0
    %v576 = vadd.f32 %v547, %v575
    %577 = vdwg.mxu0
    %578 = vst.msk [vmem:[#allocation10] sm:$0xff] %vm90, %v573
    %579 = vst.msk [vmem:[#allocation10 + $0x8] sm:$0xff] %vm90, %v576
    // Predicated region
    $region38: #{tpu_custom_call.1} parent=1 // pred_check
      _
    $region39: #{tpu_custom_call.1} parent=1 // pred_check_branch
      %581 = sbr.rel (0) target = $region41
    $region40: #{tpu_custom_call.1} parent=1 // pred_region
      %583 = vsyncadd [#allocation4], 0
      %s584 = sshll.u32 [#allocation10], 4
      %s585 = int_to_ptr.vmem [resolvable:$true] %s584
      %s586 = sshll.u32 %s5, 4
      %s587 = int_to_ptr.hbm [resolvable:$true] %s586
      %592 = dma.vmem_to_hbm [thread:$0]  %s585, 256, %s587, [#allocation4], 128, 128, 8
    $region41: #{tpu_custom_call.1} parent=1 // pred_fallthru
      _
    // Predicated region
    $region42: #{tpu_custom_call.1} parent=1 // pred_check
      _
    $region43: #{tpu_custom_call.1} parent=1 // pred_check_branch
      %594 = sbr.rel (0) target = $region45
    $region44: #{tpu_custom_call.1} parent=1 // pred_region
      %596 = dma.done [#allocation4], 256
    $region45: #{tpu_custom_call.1} parent=1 // pred_fallthru
      _
    %597 = vsyncpa [#allocation3], 1
    %598 = vsyncpa [#allocation6], 1
    %599 = vsyncpa [#allocation9], 1
    %600 = vsyncpa [#allocation4], 1

</llo_original>
